<compile_context>
chip_gen: v7x
topology: tpu7x:2x2x1
jax: 0.10.0
libtpu: 0.0.40
codegen_flags: <defaults>
</compile_context>

<pallas_src>
import functools

import jax
import jax.numpy as jnp
from jax.experimental import pallas as pl
from jax.experimental.pallas import tpu as pltpu

NEG_SLOPE = 0.01  # F.leaky_relu default negative_slope


def _round_up(x, m):
    return ((x + m - 1) // m) * m


def _vmem_limit(*nbytes, headroom=4 << 20, floor=16 << 20, cap=48 << 20):
    # Double-buffer everything conservatively, add headroom, stay under the
    # smallest physical VMEM across generations (v7x: 64 MiB).
    need = 2 * int(sum(nbytes)) + headroom
    return int(min(max(need, floor), cap))


def _leaky_relu(x):
    return jnp.where(x >= 0, x, NEG_SLOPE * x)


def _self_active_sh(x, inv_theta):
    # F.leaky_relu(x - 1/theta) - F.leaky_relu(-1.0*x - 1/theta)
    return _leaky_relu(x - inv_theta) - _leaky_relu(-1.0 * x - inv_theta)


# ----------------------------------------------------------------------------
# Kernel 1 (init): grid over views.
#   P      = sum_j X_j @ W_j^T              (pre-activation, reused by the blocks)
#   Z0     = self_active_sh(P, theta)
#   L_norm = ||Z0 @ Z0^T||_F  (via the (Cp, Cp) Gram, contraction over rows)
# ----------------------------------------------------------------------------
def _init_kernel(inv_theta_ref, x_ref, wT_ref, p_ref, z_ref, lnorm_ref):
    v = pl.program_id(0)

    @pl.when(v == 0)
    def _():
        p_ref[...] = jnp.zeros_like(p_ref)

    # (Np, Fp) @ (Fp, Cp); zero padding contributes nothing.
    p_ref[...] += jnp.dot(x_ref[...], wT_ref[...],
                          preferred_element_type=jnp.float32)

    @pl.when(v == pl.num_programs(0) - 1)
    def _():
        z = _self_active_sh(p_ref[...], inv_theta_ref[0])
        z_ref[...] = z
        # ||Z Z^T||_F == ||Z^T Z||_F; contract over the leading (row) dim
        # directly on the MXU -- no transpose materialized.
        g = jax.lax.dot_general(z, z, (((0,), (0,)), ((), ())),
                                preferred_element_type=jnp.float32)
        lnorm_ref[...] = jnp.sqrt(jnp.sum(g * g))[None, None]


def imprlnet_init(inv_theta, x_pad, wT_pad):
    V, Np, Fp = x_pad.shape
    Cp = wT_pad.shape[2]
    vmem = _vmem_limit(Np * Fp * 4, Fp * Cp * 4, 2 * Np * Cp * 4)
    p, z0, lnorm = pl.pallas_call(
        _init_kernel,
        grid=(V,),
        in_specs=[
            pl.BlockSpec(memory_space=pltpu.SMEM),              # 1/theta (1,)
            pl.BlockSpec((None, Np, Fp), lambda v: (v, 0, 0)),  # X_j
            pl.BlockSpec((None, Fp, Cp), lambda v: (v, 0, 0)),  # W_j^T (pre-transposed)
        ],
        out_specs=[
            pl.BlockSpec((Np, Cp), lambda v: (0, 0)),           # P  (resident accumulator)
            pl.BlockSpec((Np, Cp), lambda v: (0, 0)),           # Z0
            pl.BlockSpec((1, 1), lambda v: (0, 0)),             # L_norm
        ],
        out_shape=[
            jax.ShapeDtypeStruct((Np, Cp), jnp.float32),
            jax.ShapeDtypeStruct((Np, Cp), jnp.float32),
            jax.ShapeDtypeStruct((1, 1), jnp.float32),
        ],
        compiler_params=pltpu.CompilerParams(
            dimension_semantics=("arbitrary",),
            vmem_limit_bytes=vmem),
    )(inv_theta, x_pad, wT_pad)
    return p, z0, lnorm


# ----------------------------------------------------------------------------
# Kernel 2 (blocks): ALL block iterations fused, grid = (block, V); Z resident
# in VMEM scratch across the whole grid, P and Z0 resident inputs.
# TODO(synk): `DBlock` is referenced but never defined in IMPRLNet.py; a
# graph-propagation + view-projection surrogate with the same interface
# (Z, adj_j, X_j, L_norm) -> (N, n_classes) is used:
#   h_j = (1 - step) * Z + step * adj_j @ Z + beta * X_j @ W_j^T,  step = delta/L_norm
# With the projection sum P precomputed, one block iteration is:
#   Z_next = act((1 - step) * Z + (step/V) * sum_j adj_j @ Z + (beta/V) * P)
# ----------------------------------------------------------------------------
def _blocks_kernel(inv_theta_ref, step_ref, z0_ref, p_ref, adj_ref,
                   out_ref, z_cur, *, inv_n_view, beta, adj_stacked):
    b = pl.program_id(0)
    v = pl.program_id(1)

    @pl.when(jnp.logical_and(b == 0, v == 0))
    def _():
        z_cur[...] = z0_ref[...]          # seed resident Z with Z0

    @pl.when(v == 0)
    def _():
        out_ref[...] = jnp.zeros_like(out_ref)

    # Accumulate only the graph propagation across views.
    adj = adj_ref[v] if adj_stacked else adj_ref[...]
    out_ref[...] += jnp.dot(adj, z_cur[...], preferred_element_type=jnp.float32)

    @pl.when(v == pl.num_programs(1) - 1)
    def _():
        step = step_ref[0]                # delta / L_norm, precomputed on host
        z_new = _self_active_sh(
            (1.0 - step) * z_cur[...]
            + (step * inv_n_view) * out_ref[...]
            + (beta * inv_n_view) * p_ref[...],
            inv_theta_ref[0])
        out_ref[...] = z_new              # this block's output (written to HBM)
        z_cur[...] = z_new                # carried to the next block iteration


def imprlnet_blocks(inv_theta, step, z0, p, adj_s, *, n_block, beta, n_view,
                    adj_resident):
    V, Np, _ = adj_s.shape
    Cp = z0.shape[1]

    if adj_resident:
        # Whole adj stack DMA'd once, resident across all (block, view) steps.
        adj_spec = pl.BlockSpec((V, Np, Np), lambda b, v: (0, 0, 0))
        adj_bytes = V * Np * Np * 4
    else:
        # Stream one view at a time with a deeper pipeline (only DMA stream left).
        adj_spec = pl.BlockSpec((None, Np, Np), lambda b, v: (v, 0, 0),
                                pipeline_mode=pl.Buffered(3))
        adj_bytes = 3 * Np * Np * 4

    vmem = _vmem_limit(adj_bytes, 4 * Np * Cp * 4)
    kernel = functools.partial(_blocks_kernel,
                               inv_n_view=1.0 / float(n_view),
                               beta=float(beta),
                               adj_stacked=adj_resident)
    return pl.pallas_call(
        kernel,
        grid=(n_block, V),
        in_specs=[
            pl.BlockSpec(memory_space=pltpu.SMEM),              # 1/theta (1,)
            pl.BlockSpec(memory_space=pltpu.SMEM),              # step (1,)
            pl.BlockSpec((Np, Cp), lambda b, v: (0, 0)),        # Z0 (resident)
            pl.BlockSpec((Np, Cp), lambda b, v: (0, 0)),        # P  (resident)
            adj_spec,                                           # adj
        ],
        out_specs=pl.BlockSpec((None, Np, Cp), lambda b, v: (b, 0, 0)),
        out_shape=jax.ShapeDtypeStruct((n_block, Np, Cp), jnp.float32),
        scratch_shapes=[pltpu.VMEM((Np, Cp), jnp.float32)],      # resident Z carry
        compiler_params=pltpu.CompilerParams(
            dimension_semantics=("arbitrary", "arbitrary"),
            vmem_limit_bytes=vmem),
    )(inv_theta, step, z0, p, adj_s)


# ----------------------------------------------------------------------------
# Forward wrapper (padding / stacking of per-view ragged features, host-side
# weight transpose, step scalar precompute).
# ----------------------------------------------------------------------------
def imprlnet_forward(features, adj, weights, theta, *, block, beta, delta,
                     eps=1e-12, adj_resident_bytes=16 << 20):
    n_view = len(features)
    N = features[0].shape[0]
    C = weights[0].shape[0]
    fmax = max(f.shape[1] for f in features)

    Np = _round_up(N, 128)      # lane-dense contraction dim for adj @ Z
    Fp = _round_up(fmax, 128)   # lane-dense contraction dim for X @ W^T
    Cp = _round_up(C, 128)      # lane-dense class dim

    x_pad = jnp.stack([
        jnp.pad(f.astype(jnp.float32),
                ((0, Np - N), (0, Fp - f.shape[1]))) for f in features])
    # Pre-transpose S_j weights once: (C, F_j) -> (F_j, C) -> pad to (Fp, Cp).
    wT_pad = jnp.stack([
        jnp.pad(w.astype(jnp.float32).T,
                ((0, Fp - w.shape[1]), (0, Cp - C))) for w in weights])
    adj_s = jnp.stack([
        jnp.pad(a.astype(jnp.float32),
                ((0, Np - N), (0, Np - N))) for a in adj])

    inv_theta = (1.0 / theta.astype(jnp.float32)).reshape((1,))

    p, z0, lnorm = imprlnet_init(inv_theta, x_pad, wT_pad)
    lnorm = lnorm.reshape(())
    # Epsilon clamp: if Z0 lands entirely in the activation dead zone, L_norm = 0
    # and the unclamped divide produces inf/NaN in every block.
    step = (delta / jnp.maximum(lnorm, eps)).astype(jnp.float32).reshape((1,))

    adj_resident = (n_view * Np * Np * 4) <= adj_resident_bytes
    outs = imprlnet_blocks(inv_theta, step, z0, p, adj_s,
                           n_block=block, beta=beta, n_view=n_view,
                           adj_resident=adj_resident)
    # (block, Np, Cp) -> list of (N, C); == output_z[1:] in the PyTorch module.
    return [outs[i, :N, :C] for i in range(block)]


# ----------------------------------------------------------------------------
# Pure-JAX reference (same DBlock surrogate) for validation.
# ----------------------------------------------------------------------------
def _reference_forward(features, adj, weights, theta, *, block, beta, delta,
                       eps=1e-12):
    inv_theta = 1.0 / theta[0]

    def act(x):
        return (jax.nn.leaky_relu(x - inv_theta, NEG_SLOPE)
                - jax.nn.leaky_relu(-1.0 * x - inv_theta, NEG_SLOPE))

    n_view = len(features)
    z_init = 0.0
    for j in range(n_view):
        z_init = z_init + features[j] @ weights[j].T
    z = act(z_init)
    lnorm = jnp.sqrt(jnp.sum((z @ z.T) ** 2))
    step = delta / jnp.maximum(lnorm, eps)
    outs = []
    for _ in range(block):
        z_temp = 0.0
        for j in range(n_view):
            z_temp = z_temp + ((1.0 - step) * z + step * (adj[j] @ z)
                               + beta * (features[j] @ weights[j].T))
        z = act(z_temp / n_view)
        outs.append(z)
    return outs


if __name__ == "__main__":
    # Small, module-consistent shapes.
    N = 16            # number of samples / graph nodes
    n_classes = 8
    n_view = 2
    nfeats = [64, 32]
    n_block = 2
    beta, delta, thre = 0.5, 1.0, 2.0

    key = jax.random.PRNGKey(0)
    keys = jax.random.split(key, 3 * n_view)

    features = [jax.random.normal(keys[j], (N, nfeats[j]), jnp.float32)
                for j in range(n_view)]
    adj = [jax.random.uniform(keys[n_view + j], (N, N), jnp.float32)
           for j in range(n_view)]
    # Deterministic init for the no-bias Linear layers S_j: (n_classes, nfeats[j])
    weights = [jax.random.normal(keys[2 * n_view + j], (n_classes, nfeats[j]),
                                 jnp.float32) / jnp.sqrt(float(nfeats[j]))
               for j in range(n_view)]
    theta = jnp.array([thre], dtype=jnp.float32)  # nn.Parameter([args.thre])

    outs = imprlnet_forward(features, adj, weights, theta,
                            block=n_block, beta=beta, delta=delta)
    outs = [jax.block_until_ready(o) for o in outs]

    refs = _reference_forward(features, adj, weights, theta,
                              block=n_block, beta=beta, delta=delta)

    assert len(outs) == n_block
    for o, r in zip(outs, refs):
        assert o.shape == (N, n_classes)
        assert bool(jnp.all(jnp.isfinite(o)))
        err = float(jnp.max(jnp.abs(o - r)))
        assert bool(jnp.allclose(o, r, rtol=1e-4, atol=1e-4)), f"max abs err {err}"
    print("KERNEL_OK")
</pallas_src>

<mosaic_0001>
module attributes {stable_mosaic.version = 11 : i64} {
  func.func @_init_kernel(%arg0: i32, %arg1: memref<1xf32, #tpu.memory_space<smem>>, %arg2: memref<1x128x128xf32, #tpu.memory_space<vmem>>, %arg3: memref<1x128x128xf32, #tpu.memory_space<vmem>>, %arg4: memref<128x128xf32, #tpu.memory_space<vmem>>, %arg5: memref<128x128xf32, #tpu.memory_space<vmem>>, %arg6: memref<1x1xf32, #tpu.memory_space<vmem>>) attributes {dimension_semantics = [#tpu.dimension_semantics<arbitrary>], iteration_bounds = array<i64: 2>, scalar_prefetch = 0 : i64, scratch_operands = 0 : i64, tpu.core_type = #tpu.core_type<tc>, window_params = [{transform_indices = @transform_0, window_bounds = array<i64: 1>}, {transform_indices = @transform_1, window_bounds = array<i64: 1, 128, 128>}, {transform_indices = @transform_2, window_bounds = array<i64: 1, 128, 128>}, {pipeline_mode = #tpu.pipeline_mode<synchronous>, transform_indices = @transform_3, window_bounds = array<i64: 128, 128>}, {pipeline_mode = #tpu.pipeline_mode<synchronous>, transform_indices = @transform_4, window_bounds = array<i64: 128, 128>}, {pipeline_mode = #tpu.pipeline_mode<synchronous>, transform_indices = @transform_5, window_bounds = array<i64: 1, 1>}]} {
    %c0_i32 = arith.constant 0 : i32
    %0 = arith.cmpi eq, %arg0, %c0_i32 : i32
    %1 = arith.extui %0 : i1 to i32
    %c0_i32_0 = arith.constant 0 : i32
    %2 = arith.cmpi ne, %1, %c0_i32_0 : i32
    scf.if %2 {
      %cst_11 = arith.constant 0.000000e+00 : f32
      %14 = vector.broadcast %cst_11 : f32 to vector<128x128xf32>
      %c0_12 = arith.constant 0 : index
      %c0_13 = arith.constant 0 : index
      %15 = vector.load %arg4[%c0_12, %c0_13] : memref<128x128xf32, #tpu.memory_space<vmem>>, vector<128x128xf32>
      tpu.vector_store %arg4[%c0_12, %c0_13], %14 {strides = array<i32>} : memref<128x128xf32, #tpu.memory_space<vmem>>, vector<128x128xf32>,
    } else {
    }
    %c0 = arith.constant 0 : index
    %c0_1 = arith.constant 0 : index
    %3 = vector.load %arg4[%c0, %c0_1] : memref<128x128xf32, #tpu.memory_space<vmem>>, vector<128x128xf32>
    %c0_2 = arith.constant 0 : index
    %c0_3 = arith.constant 0 : index
    %c0_4 = arith.constant 0 : index
    %4 = vector.load %arg2[%c0_2, %c0_3, %c0_4] : memref<1x128x128xf32, #tpu.memory_space<vmem>>, vector<1x128x128xf32>
    %5 = vector.shape_cast %4 : vector<1x128x128xf32> to vector<128x128xf32>
    %c0_5 = arith.constant 0 : index
    %c0_6 = arith.constant 0 : index
    %c0_7 = arith.constant 0 : index
    %6 = vector.load %arg3[%c0_5, %c0_6, %c0_7] : memref<1x128x128xf32, #tpu.memory_space<vmem>>, vector<1x128x128xf32>
    %7 = vector.shape_cast %6 : vector<1x128x128xf32> to vector<128x128xf32>
    %cst = arith.constant dense<0.000000e+00> : vector<128x128xf32>
    %8 = tpu.matmul %5, %7, %cst {dimension_numbers = #tpu.dot_dimension_numbers<[1], [0], [0], [1], [0, 0, 1, 1], [], []>} : vector<128x128xf32>, vector<128x128xf32>, vector<128x128xf32> -> vector<128x128xf32>
    %9 = arith.addf %3, %8 : vector<128x128xf32>
    %c0_8 = arith.constant 0 : index
    %c0_9 = arith.constant 0 : index
    %10 = vector.load %arg4[%c0_8, %c0_9] : memref<128x128xf32, #tpu.memory_space<vmem>>, vector<128x128xf32>
    tpu.vector_store %arg4[%c0_8, %c0_9], %9 {strides = array<i32>} : memref<128x128xf32, #tpu.memory_space<vmem>>, vector<128x128xf32>,
    %c1_i32 = arith.constant 1 : i32
    %11 = arith.cmpi eq, %arg0, %c1_i32 : i32
    %12 = arith.extui %11 : i1 to i32
    %c0_i32_10 = arith.constant 0 : i32
    %13 = arith.cmpi ne, %12, %c0_i32_10 : i32
    scf.if %13 {
      %c0_11 = arith.constant 0 : index
      %c0_12 = arith.constant 0 : index
      %14 = vector.load %arg4[%c0_11, %c0_12] : memref<128x128xf32, #tpu.memory_space<vmem>>, vector<128x128xf32>
      %c0_13 = arith.constant 0 : index
      %15 = memref.load %arg1[%c0_13] : memref<1xf32, #tpu.memory_space<smem>>
      %16 = vector.broadcast %15 : f32 to vector<128x128xf32>
      %17 = arith.subf %14, %16 : vector<128x128xf32>
      %cst_14 = arith.constant 0.000000e+00 : f32
      %18 = vector.broadcast %cst_14 : f32 to vector<128x128xf32>
      %19 = arith.cmpf oge, %17, %18 : vector<128x128xf32>
      %cst_15 = arith.constant 0.00999999977 : f32
      %20 = vector.broadcast %cst_15 : f32 to vector<128x128xf32>
      %21 = arith.mulf %20, %17 : vector<128x128xf32>
      %22 = arith.select %19, %17, %21 : vector<128x128xi1>, vector<128x128xf32>
      %cst_16 = arith.constant -1.000000e+00 : f32
      %23 = vector.broadcast %cst_16 : f32 to vector<128x128xf32>
      %24 = arith.mulf %23, %14 : vector<128x128xf32>
      %25 = vector.broadcast %15 : f32 to vector<128x128xf32>
      %26 = arith.subf %24, %25 : vector<128x128xf32>
      %cst_17 = arith.constant 0.000000e+00 : f32
      %27 = vector.broadcast %cst_17 : f32 to vector<128x128xf32>
      %28 = arith.cmpf oge, %26, %27 : vector<128x128xf32>
      %cst_18 = arith.constant 0.00999999977 : f32
      %29 = vector.broadcast %cst_18 : f32 to vector<128x128xf32>
      %30 = arith.mulf %29, %26 : vector<128x128xf32>
      %31 = arith.select %28, %26, %30 : vector<128x128xi1>, vector<128x128xf32>
      %32 = arith.subf %22, %31 : vector<128x128xf32>
      %c0_19 = arith.constant 0 : index
      %c0_20 = arith.constant 0 : index
      %33 = vector.load %arg5[%c0_19, %c0_20] : memref<128x128xf32, #tpu.memory_space<vmem>>, vector<128x128xf32>
      tpu.vector_store %arg5[%c0_19, %c0_20], %32 {strides = array<i32>} : memref<128x128xf32, #tpu.memory_space<vmem>>, vector<128x128xf32>,
      %cst_21 = arith.constant dense<0.000000e+00> : vector<128x128xf32>
      %34 = tpu.matmul %32, %32, %cst_21 {dimension_numbers = #tpu.dot_dimension_numbers<[0], [0], [1], [1], [0, 1, 1, 1], [], []>} : vector<128x128xf32>, vector<128x128xf32>, vector<128x128xf32> -> vector<128x128xf32>
      %35 = arith.mulf %34, %34 : vector<128x128xf32>
      %36 = vector.shape_cast %35 : vector<128x128xf32> to vector<1x128x128xf32>
      %cst_22 = arith.constant dense<0.000000e+00> : vector<1xf32>
      %37 = vector.multi_reduction <add>, %36, %cst_22 [1, 2] : vector<1x128x128xf32> to vector<1xf32>
      %38 = vector.shape_cast %37 : vector<1xf32> to vector<1x1x1xf32>
      %39 = vector.extract %38[0, 0, 0] : f32 from vector<1x1x1xf32>
      %40 = math.sqrt %39 : f32
      %41 = vector.broadcast %40 : f32 to vector<1x1xf32>
      %c0_23 = arith.constant 0 : index
      %c0_24 = arith.constant 0 : index
      %42 = vector.load %arg6[%c0_23, %c0_24] : memref<1x1xf32, #tpu.memory_space<vmem>>, vector<1x1xf32>
      tpu.vector_store %arg6[%c0_23, %c0_24], %41 {strides = array<i32>} : memref<1x1xf32, #tpu.memory_space<vmem>>, vector<1x1xf32>,
    } else {
    }
    return
  }
  func.func @transform_0(%arg0: i32) -> i32 {
    %c0_i32 = arith.constant 0 : i32
    %c0_i32_0 = arith.constant 0 : i32
    return %c0_i32 : i32
  }
  func.func @transform_1(%arg0: i32) -> (i32, i32, i32) {
    %c0_i32 = arith.constant 0 : i32
    %c0_i32_0 = arith.constant 0 : i32
    %c0_i32_1 = arith.constant 0 : i32
    return %arg0, %c0_i32, %c0_i32_0 : i32, i32, i32
  }
  func.func @transform_2(%arg0: i32) -> (i32, i32, i32) {
    %c0_i32 = arith.constant 0 : i32
    %c0_i32_0 = arith.constant 0 : i32
    %c0_i32_1 = arith.constant 0 : i32
    return %arg0, %c0_i32, %c0_i32_0 : i32, i32, i32
  }
  func.func @transform_3(%arg0: i32) -> (i32, i32) {
    %c0_i32 = arith.constant 0 : i32
    %c0_i32_0 = arith.constant 0 : i32
    %c0_i32_1 = arith.constant 0 : i32
    return %c0_i32, %c0_i32_0 : i32, i32
  }
  func.func @transform_4(%arg0: i32) -> (i32, i32) {
    %c0_i32 = arith.constant 0 : i32
    %c0_i32_0 = arith.constant 0 : i32
    %c0_i32_1 = arith.constant 0 : i32
    return %c0_i32, %c0_i32_0 : i32, i32
  }
  func.func @transform_5(%arg0: i32) -> (i32, i32) {
    %c0_i32 = arith.constant 0 : i32
    %c0_i32_0 = arith.constant 0 : i32
    %c0_i32_1 = arith.constant 0 : i32
    return %c0_i32, %c0_i32_0 : i32, i32
  }
}

</mosaic_0001>

<llo_original>
// kernel: tpu_custom_call.1
$region0: #{tpu_custom_call.1}
  #allocation0 [shape = 'u32[]', space=smem, size = 0x4, offset = 0x4, fixed_abs, tag = 'smem constant byte address 0x4 - core index']
  #allocation1 [shape = 'u32[144,128]{1,0:T(1,128)}', space=vmem, size = 0x12000, scoped, tag = 'internal scratch']
  #allocation2 [shape = 'f32[1]{0:T(128)S(6)}', space=smem, size = 0x200, scoped, tag = 'scoped memory for tpu_custom_call.1']
  %s0 = inlined_call_operand.<no memory space> [shape: f32[1], index: 0, kind: input, shape index: {}]
  %s1 = inlined_call_operand.hbm [shape: f32[2,128,128], index: 1, kind: input, shape index: {}]
  %s2 = inlined_call_operand.hbm [shape: f32[2,128,128], index: 2, kind: input, shape index: {}]
  %s3 = inlined_call_operand.hbm [shape: f32[128,128], index: 3, kind: output, shape index: {0}]
  %s4 = inlined_call_operand.hbm [shape: f32[128,128], index: 4, kind: output, shape index: {1}]
  %s5 = inlined_call_operand.hbm [shape: f32[1,1], index: 5, kind: output, shape index: {2}]
  %6 = xla_tuple %s3, %s4, %s5
  %s7 = sld [smem:[#allocation0]]
  $region77: #{tpu_custom_call.1} parent=0
    _
  %s9 = ssub.s32 1, %s7
  %s10 = scalar_select 0, %s9, %s7
  %11 = sst [smem:[#allocation2]] %s0
  $region1: #{tpu_custom_call.1} parent=0
    #allocation3 [shape = 'u8[131072]{0}', space=vmem, size = 0x20000, scoped, tag = 'input window, operand 1']
    #allocation4 [shape = 's32[2]{0}', space=sflag, size = 0x8, scoped, tag = 'scoped memory for tpu_custom_call.1']
    #allocation5 [shape = 's32[2]{0}', space=sflag, size = 0x8, scoped, tag = 'scoped memory for tpu_custom_call.1']
    #allocation6 [shape = 'u8[131072]{0}', space=vmem, size = 0x20000, scoped, tag = 'input window, operand 2']
    #allocation7 [shape = 's32[2]{0}', space=sflag, size = 0x8, scoped, tag = 'scoped memory for tpu_custom_call.1']
    #allocation8 [shape = 'u8[65536]{0}', space=vmem, size = 0x10000, scoped, tag = 'output window, operand 0, single buffered']
    #allocation9 [shape = 'u8[65536]{0}', space=vmem, size = 0x10000, scoped, tag = 'output window, operand 1, single buffered']
    #allocation10 [shape = 's32[1]{0}', space=sflag, size = 0x4, scoped, tag = 'scoped memory for tpu_custom_call.1']
    #allocation11 [shape = 'u8[512]{0}', space=vmem, size = 0x400, scoped, tag = 'output window, operand 2, single buffered']
    %12 = vsyncpa [#allocation4], 0
    %s13 = scalar_lea.sflag [#allocation4], 1
    %14 = vsyncpa %s13, 0
    %15 = vsyncpa [#allocation7], 0
    %s16 = scalar_lea.sflag [#allocation7], 1
    %17 = vsyncpa %s16, 0
    %18 = vsyncpa [#allocation5], 0
    %19 = vsyncpa [#allocation10], 0
    loop: start=0, step=1, limit=4
    $region2: #{tpu_custom_call.1} parent=1 // loop_pre_header
      _
    $region3: #{tpu_custom_call.1} parent=1 // loop_header
      %s21 = sphi 0, %s25
      %p22 = scmp.ge.s32.totalorder %s21, 4
      %s29 = sphi 0, %s29
      %s31 = sphi 0, %s29
      %s32 = sphi 0, %s31
      %s46 = sphi 0, %s32
      %s52 = sphi 0, %s54
      %s55 = sphi 0, %s52
      %s56 = sphi 0, %s55
      %s72 = sphi 0, %s56
      %s78 = sphi 0, %s80
      %s81 = sphi 0, %s78
      %s82 = sphi 0, %s81
      %s98 = sphi 0, %s82
      %s102 = sphi 0, %s102
      %s104 = sphi 0, %s102
      %s105 = sphi 0, %s104
      %s119 = sphi 0, %s105
      %s123 = sphi 0, %s123
      %s125 = sphi 0, %s123
      %s126 = sphi 0, %s125
      %s140 = sphi 0, %s126
      %s144 = sphi 0, %s144
      %s146 = sphi 0, %s144
      %s147 = sphi 0, %s146
      %s161 = sphi 0, %s147
    $region4: #{tpu_custom_call.1} parent=1 // loop_header_branch
      %24 = sbr.rel (%p22) target = $region8
    $region5: #{tpu_custom_call.1} parent=1 // loop_body
      %s26 = ssub.s32 %s21, 1
      %s27 = ssub.s32 %s21, 2
      %s28 = sadd.s32 %s21, 1
      %s30 = sadd.s32 %s29, 1
      %p33 = scmp.eq.s32.totalorder %s21, 1
      %p34 = scmp.ne.s32.totalorder %s29, %s31
      %p35 = scmp.eq.s32.totalorder %s21, 0
      %p36 = por %p34, %p35
      %p37 = scmp.ne.s32.totalorder %s29, %s31
      %p38 = scmp.eq.s32.totalorder %s26, 1
      %p39 = por %p37, %p38
      %p40 = scmp.ne.s32.totalorder %s31, %s32
      %p41 = scmp.eq.s32.totalorder %s26, 0
      %p42 = por %p40, %p41
      %p43 = scmp.ne.s32.totalorder %s31, %s32
      %p44 = scmp.eq.s32.totalorder %s27, 1
      %p45 = por %p43, %p44
      %p47 = scmp.ne.s32.totalorder %s32, %s46
      %p48 = scmp.eq.s32.totalorder %s27, 0
      %p49 = por %p47, %p48
      %s50 = ssub.s32 %s21, %s28
      %p51 = scmp.eq.s32.totalorder %s50, 0
      %s53 = sadd.s32 %s52, 1
      %s54 = scalar_select %p51, %s52, %s53
      %p57 = pneg %p51
      %p58 = scmp.eq.s32.totalorder %s21, 1
      %p59 = por %p57, %p58
      %p60 = scmp.ne.s32.totalorder %s52, %s55
      %p61 = scmp.eq.s32.totalorder %s21, 0
      %p62 = por %p60, %p61
      %p63 = scmp.ne.s32.totalorder %s52, %s55
      %p64 = scmp.eq.s32.totalorder %s26, 1
      %p65 = por %p63, %p64
      %p66 = scmp.ne.s32.totalorder %s55, %s56
      %p67 = scmp.eq.s32.totalorder %s26, 0
      %p68 = por %p66, %p67
      %p69 = scmp.ne.s32.totalorder %s55, %s56
      %p70 = scmp.eq.s32.totalorder %s27, 1
      %p71 = por %p69, %p70
      %p73 = scmp.ne.s32.totalorder %s56, %s72
      %p74 = scmp.eq.s32.totalorder %s27, 0
      %p75 = por %p73, %p74
      %s76 = ssub.s32 %s21, %s28
      %p77 = scmp.eq.s32.totalorder %s76, 0
      %s79 = sadd.s32 %s78, 1
      %s80 = scalar_select %p77, %s78, %s79
      %p83 = pneg %p77
      %p84 = scmp.eq.s32.totalorder %s21, 1
      %p85 = por %p83, %p84
      %p86 = scmp.ne.s32.totalorder %s78, %s81
      %p87 = scmp.eq.s32.totalorder %s21, 0
      %p88 = por %p86, %p87
      %p89 = scmp.ne.s32.totalorder %s78, %s81
      %p90 = scmp.eq.s32.totalorder %s26, 1
      %p91 = por %p89, %p90
      %p92 = scmp.ne.s32.totalorder %s81, %s82
      %p93 = scmp.eq.s32.totalorder %s26, 0
      %p94 = por %p92, %p93
      %p95 = scmp.ne.s32.totalorder %s81, %s82
      %p96 = scmp.eq.s32.totalorder %s27, 1
      %p97 = por %p95, %p96
      %p99 = scmp.ne.s32.totalorder %s82, %s98
      %p100 = scmp.eq.s32.totalorder %s27, 0
      %p101 = por %p99, %p100
      %s103 = sadd.s32 %s102, 1
      %p106 = scmp.eq.s32.totalorder %s21, 1
      %p107 = scmp.ne.s32.totalorder %s102, %s104
      %p108 = scmp.eq.s32.totalorder %s21, 0
      %p109 = por %p107, %p108
      %p110 = scmp.ne.s32.totalorder %s102, %s104
      %p111 = scmp.eq.s32.totalorder %s26, 1
      %p112 = por %p110, %p111
      %p113 = scmp.ne.s32.totalorder %s104, %s105
      %p114 = scmp.eq.s32.totalorder %s26, 0
      %p115 = por %p113, %p114
      %p116 = scmp.ne.s32.totalorder %s104, %s105
      %p117 = scmp.eq.s32.totalorder %s27, 1
      %p118 = por %p116, %p117
      %p120 = scmp.ne.s32.totalorder %s105, %s119
      %p121 = scmp.eq.s32.totalorder %s27, 0
      %p122 = por %p120, %p121
      %s124 = sadd.s32 %s123, 1
      %p127 = scmp.eq.s32.totalorder %s21, 1
      %p128 = scmp.ne.s32.totalorder %s123, %s125
      %p129 = scmp.eq.s32.totalorder %s21, 0
      %p130 = por %p128, %p129
      %p131 = scmp.ne.s32.totalorder %s123, %s125
      %p132 = scmp.eq.s32.totalorder %s26, 1
      %p133 = por %p131, %p132
      %p134 = scmp.ne.s32.totalorder %s125, %s126
      %p135 = scmp.eq.s32.totalorder %s26, 0
      %p136 = por %p134, %p135
      %p137 = scmp.ne.s32.totalorder %s125, %s126
      %p138 = scmp.eq.s32.totalorder %s27, 1
      %p139 = por %p137, %p138
      %p141 = scmp.ne.s32.totalorder %s126, %s140
      %p142 = scmp.eq.s32.totalorder %s27, 0
      %p143 = por %p141, %p142
      %s145 = sadd.s32 %s144, 1
      %p148 = scmp.eq.s32.totalorder %s21, 1
      %p149 = scmp.ne.s32.totalorder %s144, %s146
      %p150 = scmp.eq.s32.totalorder %s21, 0
      %p151 = por %p149, %p150
      %p152 = scmp.ne.s32.totalorder %s144, %s146
      %p153 = scmp.eq.s32.totalorder %s26, 1
      %p154 = por %p152, %p153
      %p155 = scmp.ne.s32.totalorder %s146, %s147
      %p156 = scmp.eq.s32.totalorder %s26, 0
      %p157 = por %p155, %p156
      %p158 = scmp.ne.s32.totalorder %s146, %s147
      %p159 = scmp.eq.s32.totalorder %s27, 1
      %p160 = por %p158, %p159
      %p162 = scmp.ne.s32.totalorder %s147, %s161
      %p163 = scmp.eq.s32.totalorder %s27, 0
      %p164 = por %p162, %p163
      %p165 = scmp.le.s32.totalorder 1, %s21
      %p166 = scmp.lt.s32.totalorder %s21, 3
      %p167 = pnand %p165, %p166
      %p168 = pneg %p167
      // Predicated region
      $region9: #{tpu_custom_call.1} parent=5 // pred_check
        _
      $region10: #{tpu_custom_call.1} parent=5 // pred_check_branch
        %170 = sbr.rel (%p167) target = $region12
      $region11: #{tpu_custom_call.1} parent=5 // pred_region
        %s171 = ssub.s32 %s21, 1
        // Predicated region
        $region13: #{tpu_custom_call.1} parent=11 // pred_check
          %p172 = pneg %p42
        $region14: #{tpu_custom_call.1} parent=11 // pred_check_branch
          %174 = sbr.rel (%p172) target = $region16
        $region15: #{tpu_custom_call.1} parent=11 // pred_region
          _
        $region16: #{tpu_custom_call.1} parent=11 // pred_fallthru
          _
      $region12: #{tpu_custom_call.1} parent=5 // pred_fallthru
        _
      %p175 = scmp.lt.s32.totalorder %s21, 2
      // Predicated region
      $region17: #{tpu_custom_call.1} parent=5 // pred_check
        %p176 = pneg %p175
      $region18: #{tpu_custom_call.1} parent=5 // pred_check_branch
        %178 = sbr.rel (%p176) target = $region20
      $region19: #{tpu_custom_call.1} parent=5 // pred_region
        // Predicated region
        $region21: #{tpu_custom_call.1} parent=19 // pred_check
          %p179 = pneg %p62
        $region22: #{tpu_custom_call.1} parent=19 // pred_check_branch
          %181 = sbr.rel (%p179) target = $region24
        $region23: #{tpu_custom_call.1} parent=19 // pred_region
          %s182 = sand.u32 %s52, 1
          %s183 = scalar_lea.sflag [#allocation4], %s182
          %s184 = sand.u32 %s52, 1
          %s185 = smul.addr %s184, 128
          %s186 = scalar_lea.vmem [#allocation3], %s185
          %s188 = ssub.s32 2048, 2048
          %189 = vsyncadd %s183, %s188
          %s190 = smul.addr %s21, 16
          %s191 = smul.addr %s190, 128
          %s192 = scalar_lea.hbm %s1, %s191
          %s193 = sshll.u32 %s186, 4
          %s194 = int_to_ptr.vmem [resolvable:$true] %s193
          %199 = dma.hbm_to_vmem [thread:$0]  %s192, 2048, %s194, %s183, 128, 128, 8
        $region24: #{tpu_custom_call.1} parent=19 // pred_fallthru
          _
        // Predicated region
        $region25: #{tpu_custom_call.1} parent=19 // pred_check
          %p200 = pneg %p88
        $region26: #{tpu_custom_call.1} parent=19 // pred_check_branch
          %202 = sbr.rel (%p200) target = $region28
        $region27: #{tpu_custom_call.1} parent=19 // pred_region
          %s203 = sand.u32 %s78, 1
          %s204 = scalar_lea.sflag [#allocation7], %s203
          %s205 = sand.u32 %s78, 1
          %s206 = smul.addr %s205, 128
          %s207 = scalar_lea.vmem [#allocation6], %s206
          %s209 = ssub.s32 2048, 2048
          %210 = vsyncadd %s204, %s209
          %s211 = smul.addr %s21, 16
          %s212 = smul.addr %s211, 128
          %s213 = scalar_lea.hbm %s2, %s212
          %s214 = sshll.u32 %s207, 4
          %s215 = int_to_ptr.vmem [resolvable:$true] %s214
          %220 = dma.hbm_to_vmem [thread:$0]  %s213, 2048, %s215, %s204, 128, 128, 8
        $region28: #{tpu_custom_call.1} parent=19 // pred_fallthru
          _
      $region20: #{tpu_custom_call.1} parent=5 // pred_fallthru
        _
      %p221 = scmp.le.s32.totalorder 1, %s21
      %p222 = scmp.lt.s32.totalorder %s21, 3
      %p223 = pnand %p221, %p222
      %p224 = pneg %p223
      // Predicated region
      $region29: #{tpu_custom_call.1} parent=5 // pred_check
        _
      $region30: #{tpu_custom_call.1} parent=5 // pred_check_branch
        %226 = sbr.rel (%p223) target = $region32
      $region31: #{tpu_custom_call.1} parent=5 // pred_region
        %s227 = ssub.s32 %s21, 1
        %s228 = sand.u32 %s55, 1
        %s229 = scalar_lea.sflag [#allocation4], %s228
        %s230 = sand.u32 %s55, 1
        %s231 = smul.addr %s230, 128
        %s232 = scalar_lea.vmem [#allocation3], %s231
        // Predicated region
        $region33: #{tpu_custom_call.1} parent=31 // pred_check
          %p233 = pneg %p68
        $region34: #{tpu_custom_call.1} parent=31 // pred_check_branch
          %235 = sbr.rel (%p233) target = $region36
        $region35: #{tpu_custom_call.1} parent=31 // pred_region
          %236 = dma.done %s229, 2048
        $region36: #{tpu_custom_call.1} parent=31 // pred_fallthru
          _
        %s237 = sand.u32 %s81, 1
        %s238 = scalar_lea.sflag [#allocation7], %s237
        %s239 = sand.u32 %s81, 1
        %s240 = smul.addr %s239, 128
        %s241 = scalar_lea.vmem [#allocation6], %s240
        // Predicated region
        $region37: #{tpu_custom_call.1} parent=31 // pred_check
          %p242 = pneg %p94
        $region38: #{tpu_custom_call.1} parent=31 // pred_check_branch
          %244 = sbr.rel (%p242) target = $region40
        $region39: #{tpu_custom_call.1} parent=31 // pred_region
          %245 = dma.done %s238, 2048
        $region40: #{tpu_custom_call.1} parent=31 // pred_fallthru
          _
        %p246 = pneg %p42
        %p247 = pneg %p39
        %s248 = sand.u32 %s55, 1
        %s249 = scalar_lea.sflag [#allocation4], %s248
        %s250 = sand.u32 %s55, 1
        %s251 = smul.addr %s250, 128
        %s252 = scalar_lea.vmem [#allocation3], %s251
        %p253 = pneg %p68
        %p254 = pneg %p65
        %s255 = sand.u32 %s81, 1
        %s256 = scalar_lea.sflag [#allocation7], %s255
        %s257 = sand.u32 %s81, 1
        %s258 = smul.addr %s257, 128
        %s259 = scalar_lea.vmem [#allocation6], %s258
        %p260 = pneg %p94
        %p261 = pneg %p91
        %p262 = pneg %p115
        %p263 = pneg %p112
        %p264 = pneg %p136
        %p265 = pneg %p133
        %p266 = pneg %p157
        %p267 = pneg %p154
        %p268 = scmp.eq.s32.totalorder %s26, 0
        // Predicated region
        $region41: #{tpu_custom_call.1} parent=31 // pred_check
          %p269 = pneg %p268
        $region42: #{tpu_custom_call.1} parent=31 // pred_check_branch
          %271 = sbr.rel (%p269) target = $region44
        $region43: #{tpu_custom_call.1} parent=31 // pred_region
          %272 = vst [vmem:[#allocation8] sm:$0xff] 0.0
          %273 = vst [vmem:[#allocation8 + $0x8] sm:$0xff] 0.0
          %274 = vst [vmem:[#allocation8 + $0x10] sm:$0xff] 0.0
          %275 = vst [vmem:[#allocation8 + $0x18] sm:$0xff] 0.0
          %276 = vst [vmem:[#allocation8 + $0x20] sm:$0xff] 0.0
          %277 = vst [vmem:[#allocation8 + $0x28] sm:$0xff] 0.0
          %278 = vst [vmem:[#allocation8 + $0x30] sm:$0xff] 0.0
          %279 = vst [vmem:[#allocation8 + $0x38] sm:$0xff] 0.0
          %280 = vst [vmem:[#allocation8 + $0x40] sm:$0xff] 0.0
          %281 = vst [vmem:[#allocation8 + $0x48] sm:$0xff] 0.0
          %282 = vst [vmem:[#allocation8 + $0x50] sm:$0xff] 0.0
          %283 = vst [vmem:[#allocation8 + $0x58] sm:$0xff] 0.0
          %284 = vst [vmem:[#allocation8 + $0x60] sm:$0xff] 0.0
          %285 = vst [vmem:[#allocation8 + $0x68] sm:$0xff] 0.0
          %286 = vst [vmem:[#allocation8 + $0x70] sm:$0xff] 0.0
          %287 = vst [vmem:[#allocation8 + $0x78] sm:$0xff] 0.0
        $region44: #{tpu_custom_call.1} parent=31 // pred_fallthru
          _
        %v288 = vld [vmem:[#allocation8] sm:$0xff]
        %v289 = vld [vmem:[#allocation8 + $0x8] sm:$0xff]
        %v290 = vld [vmem:[#allocation8 + $0x10] sm:$0xff]
        %v291 = vld [vmem:[#allocation8 + $0x18] sm:$0xff]
        %v292 = vld [vmem:[#allocation8 + $0x20] sm:$0xff]
        %v293 = vld [vmem:[#allocation8 + $0x28] sm:$0xff]
        %v294 = vld [vmem:[#allocation8 + $0x30] sm:$0xff]
        %v295 = vld [vmem:[#allocation8 + $0x38] sm:$0xff]
        %v296 = vld [vmem:[#allocation8 + $0x40] sm:$0xff]
        %v297 = vld [vmem:[#allocation8 + $0x48] sm:$0xff]
        %v298 = vld [vmem:[#allocation8 + $0x50] sm:$0xff]
        %v299 = vld [vmem:[#allocation8 + $0x58] sm:$0xff]
        %v300 = vld [vmem:[#allocation8 + $0x60] sm:$0xff]
        %v301 = vld [vmem:[#allocation8 + $0x68] sm:$0xff]
        %v302 = vld [vmem:[#allocation8 + $0x70] sm:$0xff]
        %v303 = vld [vmem:[#allocation8 + $0x78] sm:$0xff]
        %v304 = vld [vmem:[%s232] sm:$0xff]
        %v305 = vld [vmem:[%s232 + $0x8] sm:$0xff]
        %v306 = vld [vmem:[%s232 + $0x10] sm:$0xff]
        %v307 = vld [vmem:[%s232 + $0x18] sm:$0xff]
        %v308 = vld [vmem:[%s232 + $0x20] sm:$0xff]
        %v309 = vld [vmem:[%s232 + $0x28] sm:$0xff]
        %v310 = vld [vmem:[%s232 + $0x30] sm:$0xff]
        %v311 = vld [vmem:[%s232 + $0x38] sm:$0xff]
        %v312 = vld [vmem:[%s232 + $0x40] sm:$0xff]
        %v313 = vld [vmem:[%s232 + $0x48] sm:$0xff]
        %v314 = vld [vmem:[%s232 + $0x50] sm:$0xff]
        %v315 = vld [vmem:[%s232 + $0x58] sm:$0xff]
        %v316 = vld [vmem:[%s232 + $0x60] sm:$0xff]
        %v317 = vld [vmem:[%s232 + $0x68] sm:$0xff]
        %v318 = vld [vmem:[%s232 + $0x70] sm:$0xff]
        %v319 = vld [vmem:[%s232 + $0x78] sm:$0xff]
        %v320 = vld [vmem:[%s241] sm:$0xff]
        %v321 = vld [vmem:[%s241 + $0x8] sm:$0xff]
        %v322 = vld [vmem:[%s241 + $0x10] sm:$0xff]
        %v323 = vld [vmem:[%s241 + $0x18] sm:$0xff]
        %v324 = vld [vmem:[%s241 + $0x20] sm:$0xff]
        %v325 = vld [vmem:[%s241 + $0x28] sm:$0xff]
        %v326 = vld [vmem:[%s241 + $0x30] sm:$0xff]
        %v327 = vld [vmem:[%s241 + $0x38] sm:$0xff]
        %v328 = vld [vmem:[%s241 + $0x40] sm:$0xff]
        %v329 = vld [vmem:[%s241 + $0x48] sm:$0xff]
        %v330 = vld [vmem:[%s241 + $0x50] sm:$0xff]
        %v331 = vld [vmem:[%s241 + $0x58] sm:$0xff]
        %v332 = vld [vmem:[%s241 + $0x60] sm:$0xff]
        %v333 = vld [vmem:[%s241 + $0x68] sm:$0xff]
        %v334 = vld [vmem:[%s241 + $0x70] sm:$0xff]
        %v335 = vld [vmem:[%s241 + $0x78] sm:$0xff]
        %336 = vmatprep.subr.mxu0 0.0
        %337 = vmatpush1.msra.mxu0 %v320
        %338 = vmatprep.subr.mxu0 0.0
        %339 = vmatpush1.msra.mxu0 %v321
        %340 = vmatprep.subr.mxu0 0.0
        %341 = vmatpush1.msra.mxu0 %v322
        %342 = vmatprep.subr.mxu0 0.0
        %343 = vmatpush1.msra.mxu0 %v323
        %344 = vmatprep.subr.mxu0 0.0
        %345 = vmatpush1.msra.mxu0 %v324
        %346 = vmatprep.subr.mxu0 0.0
        %347 = vmatpush1.msra.mxu0 %v325
        %348 = vmatprep.subr.mxu0 0.0
        %349 = vmatpush1.msra.mxu0 %v326
        %350 = vmatprep.subr.mxu0 0.0
        %351 = vmatpush1.msra.mxu0 %v327
        %352 = vmatprep.subr.mxu0 0.0
        %353 = vmatpush1.msra.mxu0 %v328
        %354 = vmatprep.subr.mxu0 0.0
        %355 = vmatpush1.msra.mxu0 %v329
        %356 = vmatprep.subr.mxu0 0.0
        %357 = vmatpush1.msra.mxu0 %v330
        %358 = vmatprep.subr.mxu0 0.0
        %359 = vmatpush1.msra.mxu0 %v331
        %360 = vmatprep.subr.mxu0 0.0
        %361 = vmatpush1.msra.mxu0 %v332
        %362 = vmatprep.subr.mxu0 0.0
        %363 = vmatpush1.msra.mxu0 %v333
        %364 = vmatprep.subr.mxu0 0.0
        %365 = vmatpush1.msra.mxu0 %v334
        %366 = vmatprep.subr.mxu0 0.0
        %367 = vmatpush1.msra.mxu0 %v335
        %368 = vmatprep.subr.mxu0 0.0
        %369 = vmatpush1.msra.mxu0 0.0
        %370 = vmatprep.subr.mxu0 0.0
        %371 = vmatpush1.msra.mxu0 0.0
        %372 = vmatprep.subr.mxu0 0.0
        %373 = vmatpush1.msra.mxu0 0.0
        %374 = vmatprep.subr.mxu0 0.0
        %375 = vmatpush1.msra.mxu0 0.0
        %376 = vmatprep.subr.mxu0 0.0
        %377 = vmatpush1.msra.mxu0 0.0
        %378 = vmatprep.subr.mxu0 0.0
        %379 = vmatpush1.msra.mxu0 0.0
        %380 = vmatprep.subr.mxu0 0.0
        %381 = vmatpush1.msra.mxu0 0.0
        %382 = vmatprep.subr.mxu0 0.0
        %383 = vmatpush1.msra.mxu0 0.0
        %384 = vmatprep.subr.mxu0 0.0
        %385 = vmatpush1.msra.mxu0 0.0
        %386 = vmatprep.subr.mxu0 0.0
        %387 = vmatpush1.msra.mxu0 0.0
        %388 = vmatprep.subr.mxu0 0.0
        %389 = vmatpush1.msra.mxu0 0.0
        %390 = vmatprep.subr.mxu0 0.0
        %391 = vmatpush1.msra.mxu0 0.0
        %392 = vmatprep.subr.mxu0 0.0
        %393 = vmatpush1.msra.mxu0 0.0
        %394 = vmatprep.subr.mxu0 0.0
        %395 = vmatpush1.msra.mxu0 0.0
        %396 = vmatprep.subr.mxu0 0.0
        %397 = vmatpush1.msra.mxu0 0.0
        %398 = vmatprep.subr.mxu0 0.0
        %399 = vmatpush1.msra.mxu0 0.0
        %400 = vmatprep.mubr.f32.mxu0 0.0
        %401 = vmatmul.mubr.f32.gmra.mrb[0].mxu0 %v304
        %v402 = vpop.f32.mrb[0].mxu0
        %v403 = vadd.f32 0.0, %v402
        %v404 = vpop.f32.mrb[0].mxu0
        %405 = vmatprep.mubr.f32.mxu0 0.0
        %406 = vmatmul.mubr.f32.gmra.mrb[0].mxu0 %v305
        %v407 = vpop.f32.mrb[0].mxu0
        %v408 = vadd.f32 0.0, %v407
        %v409 = vpop.f32.mrb[0].mxu0
        %410 = vmatprep.mubr.f32.mxu0 0.0
        %411 = vmatmul.mubr.f32.gmra.mrb[0].mxu0 %v306
        %v412 = vpop.f32.mrb[0].mxu0
        %v413 = vadd.f32 0.0, %v412
        %v414 = vpop.f32.mrb[0].mxu0
        %415 = vmatprep.mubr.f32.mxu0 0.0
        %416 = vmatmul.mubr.f32.gmra.mrb[0].mxu0 %v307
        %v417 = vpop.f32.mrb[0].mxu0
        %v418 = vadd.f32 0.0, %v417
        %v419 = vpop.f32.mrb[0].mxu0
        %420 = vmatprep.mubr.f32.mxu0 0.0
        %421 = vmatmul.mubr.f32.gmra.mrb[0].mxu0 %v308
        %v422 = vpop.f32.mrb[0].mxu0
        %v423 = vadd.f32 0.0, %v422
        %v424 = vpop.f32.mrb[0].mxu0
        %425 = vmatprep.mubr.f32.mxu0 0.0
        %426 = vmatmul.mubr.f32.gmra.mrb[0].mxu0 %v309
        %v427 = vpop.f32.mrb[0].mxu0
        %v428 = vadd.f32 0.0, %v427
        %v429 = vpop.f32.mrb[0].mxu0
        %430 = vmatprep.mubr.f32.mxu0 0.0
        %431 = vmatmul.mubr.f32.gmra.mrb[0].mxu0 %v310
        %v432 = vpop.f32.mrb[0].mxu0
        %v433 = vadd.f32 0.0, %v432
        %v434 = vpop.f32.mrb[0].mxu0
        %435 = vmatprep.mubr.f32.mxu0 0.0
        %436 = vmatmul.mubr.f32.gmra.mrb[0].mxu0 %v311
        %v437 = vpop.f32.mrb[0].mxu0
        %v438 = vadd.f32 0.0, %v437
        %v439 = vpop.f32.mrb[0].mxu0
        %440 = vmatprep.mubr.f32.mxu0 0.0
        %441 = vmatmul.mubr.f32.gmra.mrb[0].mxu0 %v312
        %v442 = vpop.f32.mrb[0].mxu0
        %v443 = vadd.f32 0.0, %v442
        %v444 = vpop.f32.mrb[0].mxu0
        %445 = vmatprep.mubr.f32.mxu0 0.0
        %446 = vmatmul.mubr.f32.gmra.mrb[0].mxu0 %v313
        %v447 = vpop.f32.mrb[0].mxu0
        %v448 = vadd.f32 0.0, %v447
        %v449 = vpop.f32.mrb[0].mxu0
        %450 = vmatprep.mubr.f32.mxu0 0.0
        %451 = vmatmul.mubr.f32.gmra.mrb[0].mxu0 %v314
        %v452 = vpop.f32.mrb[0].mxu0
        %v453 = vadd.f32 0.0, %v452
        %v454 = vpop.f32.mrb[0].mxu0
        %455 = vmatprep.mubr.f32.mxu0 0.0
        %456 = vmatmul.mubr.f32.gmra.mrb[0].mxu0 %v315
        %v457 = vpop.f32.mrb[0].mxu0
        %v458 = vadd.f32 0.0, %v457
        %v459 = vpop.f32.mrb[0].mxu0
        %460 = vmatprep.mubr.f32.mxu0 0.0
        %461 = vmatmul.mubr.f32.gmra.mrb[0].mxu0 %v316
        %v462 = vpop.f32.mrb[0].mxu0
        %v463 = vadd.f32 0.0, %v462
        %v464 = vpop.f32.mrb[0].mxu0
        %465 = vmatprep.mubr.f32.mxu0 0.0
        %466 = vmatmul.mubr.f32.gmra.mrb[0].mxu0 %v317
        %v467 = vpop.f32.mrb[0].mxu0
        %v468 = vadd.f32 0.0, %v467
        %v469 = vpop.f32.mrb[0].mxu0
        %470 = vmatprep.mubr.f32.mxu0 0.0
        %471 = vmatmul.mubr.f32.gmra.mrb[0].mxu0 %v318
        %v472 = vpop.f32.mrb[0].mxu0
        %v473 = vadd.f32 0.0, %v472
        %v474 = vpop.f32.mrb[0].mxu0
        %475 = vmatprep.mubr.f32.mxu0 0.0
        %476 = vmatmul.mubr.f32.gmra.mrb[0].mxu0 %v319
        %v477 = vpop.f32.mrb[0].mxu0
        %v478 = vadd.f32 0.0, %v477
        %v479 = vpop.f32.mrb[0].mxu0
        %480 = vdwg.mxu0
        %v481 = vadd.f32 %v288, %v403
        %v482 = vadd.f32 %v289, %v408
        %v483 = vadd.f32 %v290, %v413
        %v484 = vadd.f32 %v291, %v418
        %v485 = vadd.f32 %v292, %v423
        %v486 = vadd.f32 %v293, %v428
        %v487 = vadd.f32 %v294, %v433
        %v488 = vadd.f32 %v295, %v438
        %v489 = vadd.f32 %v296, %v443
        %v490 = vadd.f32 %v297, %v448
        %v491 = vadd.f32 %v298, %v453
        %v492 = vadd.f32 %v299, %v458
        %v493 = vadd.f32 %v300, %v463
        %v494 = vadd.f32 %v301, %v468
        %v495 = vadd.f32 %v302, %v473
        %v496 = vadd.f32 %v303, %v478
        %497 = vst [vmem:[#allocation8] sm:$0xff] %v481
        %498 = vst [vmem:[#allocation8 + $0x8] sm:$0xff] %v482
        %499 = vst [vmem:[#allocation8 + $0x10] sm:$0xff] %v483
        %500 = vst [vmem:[#allocation8 + $0x18] sm:$0xff] %v484
        %501 = vst [vmem:[#allocation8 + $0x20] sm:$0xff] %v485
        %502 = vst [vmem:[#allocation8 + $0x28] sm:$0xff] %v486
        %503 = vst [vmem:[#allocation8 + $0x30] sm:$0xff] %v487
        %504 = vst [vmem:[#allocation8 + $0x38] sm:$0xff] %v488
        %505 = vst [vmem:[#allocation8 + $0x40] sm:$0xff] %v489
        %506 = vst [vmem:[#allocation8 + $0x48] sm:$0xff] %v490
        %507 = vst [vmem:[#allocation8 + $0x50] sm:$0xff] %v491
        %508 = vst [vmem:[#allocation8 + $0x58] sm:$0xff] %v492
        %509 = vst [vmem:[#allocation8 + $0x60] sm:$0xff] %v493
        %510 = vst [vmem:[#allocation8 + $0x68] sm:$0xff] %v494
        %511 = vst [vmem:[#allocation8 + $0x70] sm:$0xff] %v495
        %512 = vst [vmem:[#allocation8 + $0x78] sm:$0xff] %v496
        %p513 = scmp.eq.s32.totalorder %s26, 1
        // Predicated region
        $region45: #{tpu_custom_call.1} parent=31 // pred_check
          %p514 = pneg %p513
        $region46: #{tpu_custom_call.1} parent=31 // pred_check_branch
          %516 = sbr.rel (%p514) target = $region48
        $region47: #{tpu_custom_call.1} parent=31 // pred_region
          %v517 = vld [vmem:[#allocation8] sm:$0xff]
          %v518 = vld [vmem:[#allocation8 + $0x8] sm:$0xff]
          %v519 = vld [vmem:[#allocation8 + $0x10] sm:$0xff]
          %v520 = vld [vmem:[#allocation8 + $0x18] sm:$0xff]
          %v521 = vld [vmem:[#allocation8 + $0x20] sm:$0xff]
          %v522 = vld [vmem:[#allocation8 + $0x28] sm:$0xff]
          %v523 = vld [vmem:[#allocation8 + $0x30] sm:$0xff]
          %v524 = vld [vmem:[#allocation8 + $0x38] sm:$0xff]
          %v525 = vld [vmem:[#allocation8 + $0x40] sm:$0xff]
          %v526 = vld [vmem:[#allocation8 + $0x48] sm:$0xff]
          %v527 = vld [vmem:[#allocation8 + $0x50] sm:$0xff]
          %v528 = vld [vmem:[#allocation8 + $0x58] sm:$0xff]
          %v529 = vld [vmem:[#allocation8 + $0x60] sm:$0xff]
          %v530 = vld [vmem:[#allocation8 + $0x68] sm:$0xff]
          %v531 = vld [vmem:[#allocation8 + $0x70] sm:$0xff]
          %v532 = vld [vmem:[#allocation8 + $0x78] sm:$0xff]
          %s533 = sld [smem:[#allocation2]]
          %v534 = vstv %s533
          %v535 = vsub.f32 %v517, %v534
          %v536 = vsub.f32 %v518, %v534
          %v537 = vsub.f32 %v519, %v534
          %v538 = vsub.f32 %v520, %v534
          %v539 = vsub.f32 %v521, %v534
          %v540 = vsub.f32 %v522, %v534
          %v541 = vsub.f32 %v523, %v534
          %v542 = vsub.f32 %v524, %v534
          %v543 = vsub.f32 %v525, %v534
          %v544 = vsub.f32 %v526, %v534
          %v545 = vsub.f32 %v527, %v534
          %v546 = vsub.f32 %v528, %v534
          %v547 = vsub.f32 %v529, %v534
          %v548 = vsub.f32 %v530, %v534
          %v549 = vsub.f32 %v531, %v534
          %v550 = vsub.f32 %v532, %v534
          %vm551 = vcmp.ge.f32.partialorder %v535, 0.0
          %vm552 = vcmp.ge.f32.partialorder %v536, 0.0
          %vm553 = vcmp.ge.f32.partialorder %v537, 0.0
          %vm554 = vcmp.ge.f32.partialorder %v538, 0.0
          %vm555 = vcmp.ge.f32.partialorder %v539, 0.0
          %vm556 = vcmp.ge.f32.partialorder %v540, 0.0
          %vm557 = vcmp.ge.f32.partialorder %v541, 0.0
          %vm558 = vcmp.ge.f32.partialorder %v542, 0.0
          %vm559 = vcmp.ge.f32.partialorder %v543, 0.0
          %vm560 = vcmp.ge.f32.partialorder %v544, 0.0
          %vm561 = vcmp.ge.f32.partialorder %v545, 0.0
          %vm562 = vcmp.ge.f32.partialorder %v546, 0.0
          %vm563 = vcmp.ge.f32.partialorder %v547, 0.0
          %vm564 = vcmp.ge.f32.partialorder %v548, 0.0
          %vm565 = vcmp.ge.f32.partialorder %v549, 0.0
          %vm566 = vcmp.ge.f32.partialorder %v550, 0.0
          %v567 = vmul.f32 %v535, 0.01
          %v568 = vmul.f32 %v536, 0.01
          %v569 = vmul.f32 %v537, 0.01
          %v570 = vmul.f32 %v538, 0.01
          %v571 = vmul.f32 %v539, 0.01
          %v572 = vmul.f32 %v540, 0.01
          %v573 = vmul.f32 %v541, 0.01
          %v574 = vmul.f32 %v542, 0.01
          %v575 = vmul.f32 %v543, 0.01
          %v576 = vmul.f32 %v544, 0.01
          %v577 = vmul.f32 %v545, 0.01
          %v578 = vmul.f32 %v546, 0.01
          %v579 = vmul.f32 %v547, 0.01
          %v580 = vmul.f32 %v548, 0.01
          %v581 = vmul.f32 %v549, 0.01
          %v582 = vmul.f32 %v550, 0.01
          %v583 = vsel %vm551, %v535, %v567
          %v584 = vsel %vm552, %v536, %v568
          %v585 = vsel %vm553, %v537, %v569
          %v586 = vsel %vm554, %v538, %v570
          %v587 = vsel %vm555, %v539, %v571
          %v588 = vsel %vm556, %v540, %v572
          %v589 = vsel %vm557, %v541, %v573
          %v590 = vsel %vm558, %v542, %v574
          %v591 = vsel %vm559, %v543, %v575
          %v592 = vsel %vm560, %v544, %v576
          %v593 = vsel %vm561, %v545, %v577
          %v594 = vsel %vm562, %v546, %v578
          %v595 = vsel %vm563, %v547, %v579
          %v596 = vsel %vm564, %v548, %v580
          %v597 = vsel %vm565, %v549, %v581
          %v598 = vsel %vm566, %v550, %v582
          %v599 = vmul.f32 %v517, -1.0
          %v600 = vmul.f32 %v518, -1.0
          %v601 = vmul.f32 %v519, -1.0
          %v602 = vmul.f32 %v520, -1.0
          %v603 = vmul.f32 %v521, -1.0
          %v604 = vmul.f32 %v522, -1.0
          %v605 = vmul.f32 %v523, -1.0
          %v606 = vmul.f32 %v524, -1.0
          %v607 = vmul.f32 %v525, -1.0
          %v608 = vmul.f32 %v526, -1.0
          %v609 = vmul.f32 %v527, -1.0
          %v610 = vmul.f32 %v528, -1.0
          %v611 = vmul.f32 %v529, -1.0
          %v612 = vmul.f32 %v530, -1.0
          %v613 = vmul.f32 %v531, -1.0
          %v614 = vmul.f32 %v532, -1.0
          %v615 = vsub.f32 %v599, %v534
          %v616 = vsub.f32 %v600, %v534
          %v617 = vsub.f32 %v601, %v534
          %v618 = vsub.f32 %v602, %v534
          %v619 = vsub.f32 %v603, %v534
          %v620 = vsub.f32 %v604, %v534
          %v621 = vsub.f32 %v605, %v534
          %v622 = vsub.f32 %v606, %v534
          %v623 = vsub.f32 %v607, %v534
          %v624 = vsub.f32 %v608, %v534
          %v625 = vsub.f32 %v609, %v534
          %v626 = vsub.f32 %v610, %v534
          %v627 = vsub.f32 %v611, %v534
          %v628 = vsub.f32 %v612, %v534
          %v629 = vsub.f32 %v613, %v534
          %v630 = vsub.f32 %v614, %v534
          %vm631 = vcmp.ge.f32.partialorder %v615, 0.0
          %vm632 = vcmp.ge.f32.partialorder %v616, 0.0
          %vm633 = vcmp.ge.f32.partialorder %v617, 0.0
          %vm634 = vcmp.ge.f32.partialorder %v618, 0.0
          %vm635 = vcmp.ge.f32.partialorder %v619, 0.0
          %vm636 = vcmp.ge.f32.partialorder %v620, 0.0
          %vm637 = vcmp.ge.f32.partialorder %v621, 0.0
          %vm638 = vcmp.ge.f32.partialorder %v622, 0.0
          %vm639 = vcmp.ge.f32.partialorder %v623, 0.0
          %vm640 = vcmp.ge.f32.partialorder %v624, 0.0
          %vm641 = vcmp.ge.f32.partialorder %v625, 0.0
          %vm642 = vcmp.ge.f32.partialorder %v626, 0.0
          %vm643 = vcmp.ge.f32.partialorder %v627, 0.0
          %vm644 = vcmp.ge.f32.partialorder %v628, 0.0
          %vm645 = vcmp.ge.f32.partialorder %v629, 0.0
          %vm646 = vcmp.ge.f32.partialorder %v630, 0.0
          %v647 = vmul.f32 %v615, 0.01
          %v648 = vmul.f32 %v616, 0.01
          %v649 = vmul.f32 %v617, 0.01
          %v650 = vmul.f32 %v618, 0.01
          %v651 = vmul.f32 %v619, 0.01
          %v652 = vmul.f32 %v620, 0.01
          %v653 = vmul.f32 %v621, 0.01
          %v654 = vmul.f32 %v622, 0.01
          %v655 = vmul.f32 %v623, 0.01
          %v656 = vmul.f32 %v624, 0.01
          %v657 = vmul.f32 %v625, 0.01
          %v658 = vmul.f32 %v626, 0.01
          %v659 = vmul.f32 %v627, 0.01
          %v660 = vmul.f32 %v628, 0.01
          %v661 = vmul.f32 %v629, 0.01
          %v662 = vmul.f32 %v630, 0.01
          %v663 = vsel %vm631, %v615, %v647
          %v664 = vsel %vm632, %v616, %v648
          %v665 = vsel %vm633, %v617, %v649
          %v666 = vsel %vm634, %v618, %v650
          %v667 = vsel %vm635, %v619, %v651
          %v668 = vsel %vm636, %v620, %v652
          %v669 = vsel %vm637, %v621, %v653
          %v670 = vsel %vm638, %v622, %v654
          %v671 = vsel %vm639, %v623, %v655
          %v672 = vsel %vm640, %v624, %v656
          %v673 = vsel %vm641, %v625, %v657
          %v674 = vsel %vm642, %v626, %v658
          %v675 = vsel %vm643, %v627, %v659
          %v676 = vsel %vm644, %v628, %v660
          %v677 = vsel %vm645, %v629, %v661
          %v678 = vsel %vm646, %v630, %v662
          %v679 = vsub.f32 %v583, %v663
          %v680 = vsub.f32 %v584, %v664
          %v681 = vsub.f32 %v585, %v665
          %v682 = vsub.f32 %v586, %v666
          %v683 = vsub.f32 %v587, %v667
          %v684 = vsub.f32 %v588, %v668
          %v685 = vsub.f32 %v589, %v669
          %v686 = vsub.f32 %v590, %v670
          %v687 = vsub.f32 %v591, %v671
          %v688 = vsub.f32 %v592, %v672
          %v689 = vsub.f32 %v593, %v673
          %v690 = vsub.f32 %v594, %v674
          %v691 = vsub.f32 %v595, %v675
          %v692 = vsub.f32 %v596, %v676
          %v693 = vsub.f32 %v597, %v677
          %v694 = vsub.f32 %v598, %v678
          %695 = vst [vmem:[#allocation9] sm:$0xff] %v679
          %696 = vst [vmem:[#allocation9 + $0x8] sm:$0xff] %v680
          %697 = vst [vmem:[#allocation9 + $0x10] sm:$0xff] %v681
          %698 = vst [vmem:[#allocation9 + $0x18] sm:$0xff] %v682
          %699 = vst [vmem:[#allocation9 + $0x20] sm:$0xff] %v683
          %700 = vst [vmem:[#allocation9 + $0x28] sm:$0xff] %v684
          %701 = vst [vmem:[#allocation9 + $0x30] sm:$0xff] %v685
          %702 = vst [vmem:[#allocation9 + $0x38] sm:$0xff] %v686
          %703 = vst [vmem:[#allocation9 + $0x40] sm:$0xff] %v687
          %704 = vst [vmem:[#allocation9 + $0x48] sm:$0xff] %v688
          %705 = vst [vmem:[#allocation9 + $0x50] sm:$0xff] %v689
          %706 = vst [vmem:[#allocation9 + $0x58] sm:$0xff] %v690
          %707 = vst [vmem:[#allocation9 + $0x60] sm:$0xff] %v691
          %708 = vst [vmem:[#allocation9 + $0x68] sm:$0xff] %v692
          %709 = vst [vmem:[#allocation9 + $0x70] sm:$0xff] %v693
          %710 = vst [vmem:[#allocation9 + $0x78] sm:$0xff] %v694
          %711 = vxpose.xlu0.b32.start [1/16] %v679, 128
          %712 = vxpose.xlu0.b32.cont [2/16] %v680, 128
          %713 = vxpose.xlu0.b32.cont [3/16] %v681, 128
          %714 = vxpose.xlu0.b32.cont [4/16] %v682, 128
          %715 = vxpose.xlu0.b32.cont [5/16] %v683, 128
          %716 = vxpose.xlu0.b32.cont [6/16] %v684, 128
          %717 = vxpose.xlu0.b32.cont [7/16] %v685, 128
          %718 = vxpose.xlu0.b32.cont [8/16] %v686, 128
          %719 = vxpose.xlu0.b32.cont [9/16] %v687, 128
          %720 = vxpose.xlu0.b32.cont [10/16] %v688, 128
          %721 = vxpose.xlu0.b32.cont [11/16] %v689, 128
          %722 = vxpose.xlu0.b32.cont [12/16] %v690, 128
          %723 = vxpose.xlu0.b32.cont [13/16] %v691, 128
          %724 = vxpose.xlu0.b32.cont [14/16] %v692, 128
          %725 = vxpose.xlu0.b32.cont [15/16] %v693, 128
          %726 = vxpose.xlu0.b32.end [16/16] %v694, 128
          %v727 = vpop.trf.xlu0
          %v728 = vpop.trf.xlu0
          %v729 = vpop.trf.xlu0
          %v730 = vpop.trf.xlu0
          %v731 = vpop.trf.xlu0
          %v732 = vpop.trf.xlu0
          %v733 = vpop.trf.xlu0
          %v734 = vpop.trf.xlu0
          %v735 = vpop.trf.xlu0
          %v736 = vpop.trf.xlu0
          %v737 = vpop.trf.xlu0
          %v738 = vpop.trf.xlu0
          %v739 = vpop.trf.xlu0
          %v740 = vpop.trf.xlu0
          %v741 = vpop.trf.xlu0
          %v742 = vpop.trf.xlu0
          %743 = vmatprep.subr.mxu0 0.0
          %744 = vmatpush1.msra.mxu0 %v679
          %745 = vmatprep.subr.mxu0 0.0
          %746 = vmatpush1.msra.mxu0 %v680
          %747 = vmatprep.subr.mxu0 0.0
          %748 = vmatpush1.msra.mxu0 %v681
          %749 = vmatprep.subr.mxu0 0.0
          %750 = vmatpush1.msra.mxu0 %v682
          %751 = vmatprep.subr.mxu0 0.0
          %752 = vmatpush1.msra.mxu0 %v683
          %753 = vmatprep.subr.mxu0 0.0
          %754 = vmatpush1.msra.mxu0 %v684
          %755 = vmatprep.subr.mxu0 0.0
          %756 = vmatpush1.msra.mxu0 %v685
          %757 = vmatprep.subr.mxu0 0.0
          %758 = vmatpush1.msra.mxu0 %v686
          %759 = vmatprep.subr.mxu0 0.0
          %760 = vmatpush1.msra.mxu0 %v687
          %761 = vmatprep.subr.mxu0 0.0
          %762 = vmatpush1.msra.mxu0 %v688
          %763 = vmatprep.subr.mxu0 0.0
          %764 = vmatpush1.msra.mxu0 %v689
          %765 = vmatprep.subr.mxu0 0.0
          %766 = vmatpush1.msra.mxu0 %v690
          %767 = vmatprep.subr.mxu0 0.0
          %768 = vmatpush1.msra.mxu0 %v691
          %769 = vmatprep.subr.mxu0 0.0
          %770 = vmatpush1.msra.mxu0 %v692
          %771 = vmatprep.subr.mxu0 0.0
          %772 = vmatpush1.msra.mxu0 %v693
          %773 = vmatprep.subr.mxu0 0.0
          %774 = vmatpush1.msra.mxu0 %v694
          %775 = vmatprep.subr.mxu0 0.0
          %776 = vmatpush1.msra.mxu0 0.0
          %777 = vmatprep.subr.mxu0 0.0
          %778 = vmatpush1.msra.mxu0 0.0
          %779 = vmatprep.subr.mxu0 0.0
          %780 = vmatpush1.msra.mxu0 0.0
          %781 = vmatprep.subr.mxu0 0.0
          %782 = vmatpush1.msra.mxu0 0.0
          %783 = vmatprep.subr.mxu0 0.0
          %784 = vmatpush1.msra.mxu0 0.0
          %785 = vmatprep.subr.mxu0 0.0
          %786 = vmatpush1.msra.mxu0 0.0
          %787 = vmatprep.subr.mxu0 0.0
          %788 = vmatpush1.msra.mxu0 0.0
          %789 = vmatprep.subr.mxu0 0.0
          %790 = vmatpush1.msra.mxu0 0.0
          %791 = vmatprep.subr.mxu0 0.0
          %792 = vmatpush1.msra.mxu0 0.0
          %793 = vmatprep.subr.mxu0 0.0
          %794 = vmatpush1.msra.mxu0 0.0
          %795 = vmatprep.subr.mxu0 0.0
          %796 = vmatpush1.msra.mxu0 0.0
          %797 = vmatprep.subr.mxu0 0.0
          %798 = vmatpush1.msra.mxu0 0.0
          %799 = vmatprep.subr.mxu0 0.0
          %800 = vmatpush1.msra.mxu0 0.0
          %801 = vmatprep.subr.mxu0 0.0
          %802 = vmatpush1.msra.mxu0 0.0
          %803 = vmatprep.subr.mxu0 0.0
          %804 = vmatpush1.msra.mxu0 0.0
          %805 = vmatprep.subr.mxu0 0.0
          %806 = vmatpush1.msra.mxu0 0.0
          %807 = vmatprep.mubr.f32.mxu0 0.0
          %808 = vmatmul.mubr.f32.gmra.mrb[0].mxu0 %v727
          %v809 = vpop.f32.mrb[0].mxu0
          %v810 = vadd.f32 0.0, %v809
          %v811 = vpop.f32.mrb[0].mxu0
          %812 = vmatprep.mubr.f32.mxu0 0.0
          %813 = vmatmul.mubr.f32.gmra.mrb[0].mxu0 %v728
          %v814 = vpop.f32.mrb[0].mxu0
          %v815 = vadd.f32 0.0, %v814
          %v816 = vpop.f32.mrb[0].mxu0
          %817 = vmatprep.mubr.f32.mxu0 0.0
          %818 = vmatmul.mubr.f32.gmra.mrb[0].mxu0 %v729
          %v819 = vpop.f32.mrb[0].mxu0
          %v820 = vadd.f32 0.0, %v819
          %v821 = vpop.f32.mrb[0].mxu0
          %822 = vmatprep.mubr.f32.mxu0 0.0
          %823 = vmatmul.mubr.f32.gmra.mrb[0].mxu0 %v730
          %v824 = vpop.f32.mrb[0].mxu0
          %v825 = vadd.f32 0.0, %v824
          %v826 = vpop.f32.mrb[0].mxu0
          %827 = vmatprep.mubr.f32.mxu0 0.0
          %828 = vmatmul.mubr.f32.gmra.mrb[0].mxu0 %v731
          %v829 = vpop.f32.mrb[0].mxu0
          %v830 = vadd.f32 0.0, %v829
          %v831 = vpop.f32.mrb[0].mxu0
          %832 = vmatprep.mubr.f32.mxu0 0.0
          %833 = vmatmul.mubr.f32.gmra.mrb[0].mxu0 %v732
          %v834 = vpop.f32.mrb[0].mxu0
          %v835 = vadd.f32 0.0, %v834
          %v836 = vpop.f32.mrb[0].mxu0
          %837 = vmatprep.mubr.f32.mxu0 0.0
          %838 = vmatmul.mubr.f32.gmra.mrb[0].mxu0 %v733
          %v839 = vpop.f32.mrb[0].mxu0
          %v840 = vadd.f32 0.0, %v839
          %v841 = vpop.f32.mrb[0].mxu0
          %842 = vmatprep.mubr.f32.mxu0 0.0
          %843 = vmatmul.mubr.f32.gmra.mrb[0].mxu0 %v734
          %v844 = vpop.f32.mrb[0].mxu0
          %v845 = vadd.f32 0.0, %v844
          %v846 = vpop.f32.mrb[0].mxu0
          %847 = vmatprep.mubr.f32.mxu0 0.0
          %848 = vmatmul.mubr.f32.gmra.mrb[0].mxu0 %v735
          %v849 = vpop.f32.mrb[0].mxu0
          %v850 = vadd.f32 0.0, %v849
          %v851 = vpop.f32.mrb[0].mxu0
          %852 = vmatprep.mubr.f32.mxu0 0.0
          %853 = vmatmul.mubr.f32.gmra.mrb[0].mxu0 %v736
          %v854 = vpop.f32.mrb[0].mxu0
          %v855 = vadd.f32 0.0, %v854
          %v856 = vpop.f32.mrb[0].mxu0
          %857 = vmatprep.mubr.f32.mxu0 0.0
          %858 = vmatmul.mubr.f32.gmra.mrb[0].mxu0 %v737
          %v859 = vpop.f32.mrb[0].mxu0
          %v860 = vadd.f32 0.0, %v859
          %v861 = vpop.f32.mrb[0].mxu0
          %862 = vmatprep.mubr.f32.mxu0 0.0
          %863 = vmatmul.mubr.f32.gmra.mrb[0].mxu0 %v738
          %v864 = vpop.f32.mrb[0].mxu0
          %v865 = vadd.f32 0.0, %v864
          %v866 = vpop.f32.mrb[0].mxu0
          %867 = vmatprep.mubr.f32.mxu0 0.0
          %868 = vmatmul.mubr.f32.gmra.mrb[0].mxu0 %v739
          %v869 = vpop.f32.mrb[0].mxu0
          %v870 = vadd.f32 0.0, %v869
          %v871 = vpop.f32.mrb[0].mxu0
          %872 = vmatprep.mubr.f32.mxu0 0.0
          %873 = vmatmul.mubr.f32.gmra.mrb[0].mxu0 %v740
          %v874 = vpop.f32.mrb[0].mxu0
          %v875 = vadd.f32 0.0, %v874
          %v876 = vpop.f32.mrb[0].mxu0
          %877 = vmatprep.mubr.f32.mxu0 0.0
          %878 = vmatmul.mubr.f32.gmra.mrb[0].mxu0 %v741
          %v879 = vpop.f32.mrb[0].mxu0
          %v880 = vadd.f32 0.0, %v879
          %v881 = vpop.f32.mrb[0].mxu0
          %882 = vmatprep.mubr.f32.mxu0 0.0
          %883 = vmatmul.mubr.f32.gmra.mrb[0].mxu0 %v742
          %v884 = vpop.f32.mrb[0].mxu0
          %v885 = vadd.f32 0.0, %v884
          %v886 = vpop.f32.mrb[0].mxu0
          %887 = vdwg.mxu0
          %v888 = vmul.f32 %v810, %v810
          %v889 = vmul.f32 %v815, %v815
          %v890 = vmul.f32 %v820, %v820
          %v891 = vmul.f32 %v825, %v825
          %v892 = vmul.f32 %v830, %v830
          %v893 = vmul.f32 %v835, %v835
          %v894 = vmul.f32 %v840, %v840
          %v895 = vmul.f32 %v845, %v845
          %v896 = vmul.f32 %v850, %v850
          %v897 = vmul.f32 %v855, %v855
          %v898 = vmul.f32 %v860, %v860
          %v899 = vmul.f32 %v865, %v865
          %v900 = vmul.f32 %v870, %v870
          %v901 = vmul.f32 %v875, %v875
          %v902 = vmul.f32 %v880, %v880
          %v903 = vmul.f32 %v885, %v885
          %v904 = vadd.f32 %v888, %v889
          %v905 = vadd.f32 %v904, %v890
          %v906 = vadd.f32 %v905, %v891
          %v907 = vadd.f32 %v906, %v892
          %v908 = vadd.f32 %v907, %v893
          %v909 = vadd.f32 %v908, %v894
          %v910 = vadd.f32 %v909, %v895
          %v911 = vadd.f32 %v910, %v896
          %v912 = vadd.f32 %v911, %v897
          %v913 = vadd.f32 %v912, %v898
          %v914 = vadd.f32 %v913, %v899
          %v915 = vadd.f32 %v914, %v900
          %v916 = vadd.f32 %v915, %v901
          %v917 = vadd.f32 %v916, %v902
          %v918 = vadd.f32 %v917, %v903
          %919 = vadd.xlane.f32.xlu0 %v918
          %v920 = vpop.xlane.xlu0 %919
          %v921 = vrot.slane %v920, 4
          %v922 = vadd.f32 %v920, %v921
          %v923 = vrot.slane %v922, 2
          %v924 = vadd.f32 %v922, %v923
          %v925 = vrot.slane %v924, 1
          %v926 = vadd.f32 %v924, %v925
          %s927 = vtos %v926
          %v928 = vstv %s927
          %v929 = vrsqrt.pop %v928
          %v930 = vmul.f32 %v928, %v929
          %vm931 = vcmp.eq.f32.partialorder %v928, inf
          %v932 = vsel %vm931, %v928, %v930
          %vm933 = vcmp.eq.f32.partialorder %v928, 0.0
          %v934 = vand.u32 %v928, 2147483648
          %v935 = vsel %vm933, %v934, %v932
          %s936 = vtos %v935
          %v937 = vstv %s936
          %vm938 = vcmask 0
          %939 = vst.msk [vmem:[#allocation11] sm:$0x1] %vm938, %v937
        $region48: #{tpu_custom_call.1} parent=31 // pred_fallthru
          _
        // Predicated region
        $region49: #{tpu_custom_call.1} parent=31 // pred_check
          %p940 = pneg %p112
        $region50: #{tpu_custom_call.1} parent=31 // pred_check_branch
          %942 = sbr.rel (%p940) target = $region52
        $region51: #{tpu_custom_call.1} parent=31 // pred_region
          %s944 = ssub.s32 2048, 2048
          %945 = vsyncadd [#allocation5], %s944
          %s946 = sshll.u32 [#allocation8], 4
          %s947 = int_to_ptr.vmem [resolvable:$true] %s946
          %952 = dma.vmem_to_hbm [thread:$0]  %s947, 2048, %s3, [#allocation5], 128, 128, 8
        $region52: #{tpu_custom_call.1} parent=31 // pred_fallthru
          _
        // Predicated region
        $region53: #{tpu_custom_call.1} parent=31 // pred_check
          %p953 = pneg %p133
        $region54: #{tpu_custom_call.1} parent=31 // pred_check_branch
          %955 = sbr.rel (%p953) target = $region56
        $region55: #{tpu_custom_call.1} parent=31 // pred_region
          %s957 = ssub.s32 2048, 2048
          %958 = vsyncadd [#allocation10], %s957
          %s959 = sshll.u32 [#allocation9], 4
          %s960 = int_to_ptr.vmem [resolvable:$true] %s959
          %965 = dma.vmem_to_hbm [thread:$0]  %s960, 2048, %s4, [#allocation10], 128, 128, 8
        $region56: #{tpu_custom_call.1} parent=31 // pred_fallthru
          _
        // Predicated region
        $region57: #{tpu_custom_call.1} parent=31 // pred_check
          %p966 = pneg %p154
        $region58: #{tpu_custom_call.1} parent=31 // pred_check_branch
          %968 = sbr.rel (%p966) target = $region60
        $region59: #{tpu_custom_call.1} parent=31 // pred_region
          %s970 = ssub.s32 16, 16
          %971 = vsyncadd [#allocation10], %s970
          %s973 = sshll.u32 [#allocation11], 4
          %s974 = int_to_ptr.vmem [resolvable:$true] %s973
          %976 = dma.vmem_to_hbm [thread:$0]  %s974, 16, %s5, [#allocation10]
        $region60: #{tpu_custom_call.1} parent=31 // pred_fallthru
          _
        // Predicated region
        $region61: #{tpu_custom_call.1} parent=31 // pred_check
          %p977 = pneg %p112
        $region62: #{tpu_custom_call.1} parent=31 // pred_check_branch
          %979 = sbr.rel (%p977) target = $region64
        $region63: #{tpu_custom_call.1} parent=31 // pred_region
          %980 = dma.done [#allocation5], 2048
        $region64: #{tpu_custom_call.1} parent=31 // pred_fallthru
          _
        // Predicated region
        $region65: #{tpu_custom_call.1} parent=31 // pred_check
          %p981 = pneg %p133
        $region66: #{tpu_custom_call.1} parent=31 // pred_check_branch
          %983 = sbr.rel (%p981) target = $region68
        $region67: #{tpu_custom_call.1} parent=31 // pred_region
          %984 = dma.done [#allocation10], 2048
        $region68: #{tpu_custom_call.1} parent=31 // pred_fallthru
          _
        // Predicated region
        $region69: #{tpu_custom_call.1} parent=31 // pred_check
          %p985 = pneg %p154
        $region70: #{tpu_custom_call.1} parent=31 // pred_check_branch
          %987 = sbr.rel (%p985) target = $region72
        $region71: #{tpu_custom_call.1} parent=31 // pred_region
          %988 = dma.done [#allocation10], 16
        $region72: #{tpu_custom_call.1} parent=31 // pred_fallthru
          _
      $region32: #{tpu_custom_call.1} parent=5 // pred_fallthru
        _
      %p989 = scmp.le.s32.totalorder 2, %s21
      // Predicated region
      $region73: #{tpu_custom_call.1} parent=5 // pred_check
        %p990 = pneg %p989
      $region74: #{tpu_custom_call.1} parent=5 // pred_check_branch
        %992 = sbr.rel (%p990) target = $region76
      $region75: #{tpu_custom_call.1} parent=5 // pred_region
        %s993 = ssub.s32 %s21, 2
      $region76: #{tpu_custom_call.1} parent=5 // pred_fallthru
        _
    $region6: #{tpu_custom_call.1} parent=1 // loop_footer
      %s25 = sadd.s32 1, %s21
    $region7: #{tpu_custom_call.1} parent=1 // loop_footer_branch
      %20 = sbr.rel target = $region3
    $region8: #{tpu_custom_call.1} parent=1 // loop_exit
      _
    %994 = vsyncpa [#allocation4], 1
    %s995 = scalar_lea.sflag [#allocation4], 1
    %996 = vsyncpa %s995, 1
    %997 = vsyncpa [#allocation7], 1
    %s998 = scalar_lea.sflag [#allocation7], 1
    %999 = vsyncpa %s998, 1
    %1000 = vsyncpa [#allocation5], 1
    %s1001 = scalar_lea.sflag [#allocation5], 1
    %1002 = vsyncpa %s1001, 1
    %1003 = vsyncpa [#allocation10], 1

</llo_original>
